<compile_context>
chip_gen: v7x
topology: tpu7x:2x2x1
jax: 0.10.0
libtpu: 0.0.40
codegen_flags: <defaults>
</compile_context>

<pallas_src>
import functools

import jax
import jax.numpy as jnp
from jax import lax
from jax.experimental import pallas as pl
from jax.experimental.pallas import tpu as pltpu

_LANE = 128
_BLOCK_INPUT_BUDGET = 6 * 1024 * 1024   # padded *input* bytes per grid step (double-buffered)
_MIN_STEP_INPUT = 1 * 1024 * 1024       # never shrink a step below this just to add steps
_VMEM_LIMIT_FLOOR = 32 * 1024 * 1024    # scoped-VMEM limit we request (safe on v5e/v6e/v7x)


def _round_up(x, m):
    return ((x + m - 1) // m) * m


def _sublane(dtype):
    # Sublane packing multiple for the second-to-last dim.
    return {4: 8, 2: 16, 1: 32}.get(jnp.dtype(dtype).itemsize, 8)


def _maxpool_kernel(x_ref, o_ref, *scratch, kernel, stride):
    """Max-pool one block.

    x_ref : (tn, h_in_blk, W)   VMEM input tile  (tn images, full width)
    o_ref : (tn, th_out, out_w) VMEM output tile
    scratch (only when stride > 1): wt_ref (tn, W, th_out) — W-on-sublanes staging.
    """
    tn, th_out, out_w = o_ref.shape

    # ---- Pass 1 (H axis, sublanes): `kernel` (strided) sublane loads + max. ----
    def h_rows(ki):
        if stride == 1:
            return x_ref[:, pl.ds(ki, th_out), :]
        return x_ref[:, pl.ds(ki, th_out, stride=stride), :]

    acc = h_rows(0)
    for ki in range(1, kernel):
        acc = jnp.maximum(acc, h_rows(ki))                 # (tn, th_out, W)

    # ---- Pass 2 (W axis, lanes). ----------------------------------------------
    if stride == 1:
        # Contiguous shifted slices only; no compaction needed.
        out = acc[:, :, 0:out_w]
        for kj in range(1, kernel):
            out = jnp.maximum(out, acc[:, :, kj:kj + out_w])
    else:
        # Move W onto the sublane axis once (XLU transpose, separate VLIW slot),
        # then do the strided window selection as cheap sublane-strided ref loads
        # instead of out_w per-column lane slices + a big concatenate.
        wt_ref = scratch[0]
        wt_ref[...] = jnp.transpose(acc.astype(wt_ref.dtype), (0, 2, 1))  # (tn, W, th_out)

        def w_rows(kj):
            return wt_ref[:, pl.ds(kj, out_w, stride=stride), :]

        out_t = w_rows(0)
        for kj in range(1, kernel):
            out_t = jnp.maximum(out_t, w_rows(kj))         # (tn, out_w, th_out)
        out = jnp.transpose(out_t, (0, 2, 1))              # (tn, th_out, out_w)

    o_ref[...] = out.astype(o_ref.dtype)


def max_pool2d(x_nchw, kernel, stride, *, block_out_rows=None):
    """torch.nn.MaxPool2d(kernel, stride) on an NCHW input (VALID padding)."""
    kernel = int(kernel)
    stride = int(stride)
    if kernel < 1 or stride < 1:
        raise ValueError("kernel and stride must be >= 1")
    B, C, H, W = x_nchw.shape
    out_h = (H - kernel) // stride + 1
    out_w = (W - kernel) // stride + 1
    if out_h <= 0 or out_w <= 0:
        raise ValueError("pooling window larger than input")

    N = B * C
    x = x_nchw.reshape(N, H, W)                            # free view, no transpose
    dtype = x.dtype
    itemsize = jnp.dtype(dtype).itemsize
    sub = _sublane(dtype)
    lane_w = _round_up(W, _LANE)

    def padded_in_bytes(rows, n_imgs=1):
        # Real VMEM footprint of (n_imgs, rows, W): rows pad to sublane, W to 128.
        return n_imgs * _round_up(rows, sub) * lane_w * itemsize

    img_bytes = padded_in_bytes(H)

    # ---------------- choose tiling (padded-VMEM accounting) ----------------
    if block_out_rows is not None and kernel <= stride:
        # Test/override hook: force exact (halo-free) H tiling with th_out rows.
        tn = 1
        th_out = max(sub, _round_up(min(int(block_out_rows), out_h), sub))
        h_in_blk = th_out * stride
        if th_out >= out_h:
            th_out, h_in_blk = out_h, H
    elif kernel <= stride and img_bytes > _BLOCK_INPUT_BUDGET and out_h > sub:
        # Exact H tiling: th_out output rows consume exactly th_out*stride input rows.
        tn = 1
        cap = _BLOCK_INPUT_BUDGET // max(1, stride * lane_w * itemsize)
        th_out = max(sub, (min(cap, out_h) // sub) * sub)
        h_in_blk = th_out * stride
        if th_out >= out_h:
            th_out, h_in_blk = out_h, H
    else:
        # Whole images per block; allow a partial last N block (no even-split loop).
        th_out, h_in_blk = out_h, H
        if img_bytes <= _BLOCK_INPUT_BUDGET:
            tn = max(1, min(N, _BLOCK_INPUT_BUDGET // img_bytes))
            # Prefer ~4 grid steps for pipelining / v7x megacore, but never shrink a
            # step below ~1 MiB of padded input just to add steps.
            if tn > 1 and pl.cdiv(N, tn) < 4:
                tn_4 = max(1, pl.cdiv(N, 4))
                if tn_4 < tn and padded_in_bytes(H, tn_4) >= _MIN_STEP_INPUT:
                    tn = tn_4
        else:
            tn = 1  # big overlapping-pool image: see TODO(synk) at top of file.

    grid = (pl.cdiv(N, tn), pl.cdiv(out_h, th_out))

    # Scratch for the W-on-sublanes pass (stride > 1 only).  Sub-32-bit dtypes are
    # staged in f32 so the transpose / strided loads stay on the plain 32-bit path.
    compute_dtype = dtype if itemsize == 4 else jnp.float32
    scratch_shapes = []
    wt_bytes = 0
    if stride > 1:
        scratch_shapes.append(pltpu.VMEM((tn, W, th_out), compute_dtype))
        wt_bytes = (tn * _round_up(W, _sublane(compute_dtype))
                    * _round_up(th_out, _LANE) * jnp.dtype(compute_dtype).itemsize)

    # Scoped-VMEM request: double-buffered in+out blocks + scratch + headroom.
    in_blk_bytes = padded_in_bytes(h_in_blk, tn)
    out_blk_bytes = tn * _round_up(th_out, sub) * _round_up(out_w, _LANE) * itemsize
    vmem_need = 2 * (in_blk_bytes + out_blk_bytes) + wt_bytes + (2 << 20)
    vmem_limit = int(max(_VMEM_LIMIT_FLOOR, vmem_need))

    kern = functools.partial(_maxpool_kernel, kernel=kernel, stride=stride)

    cost = pl.CostEstimate(
        flops=int(N * out_h * out_w * max(kernel * kernel - 1, 0)),
        transcendentals=0,
        bytes_accessed=int(N * H * W * itemsize + N * out_h * out_w * itemsize),
    )

    out = pl.pallas_call(
        kern,
        grid=grid,
        in_specs=[pl.BlockSpec((tn, h_in_blk, W), lambda n, h: (n, h, 0))],
        out_specs=pl.BlockSpec((tn, th_out, out_w), lambda n, h: (n, h, 0)),
        out_shape=jax.ShapeDtypeStruct((N, out_h, out_w), dtype),
        scratch_shapes=scratch_shapes,
        compiler_params=pltpu.CompilerParams(
            dimension_semantics=("parallel", "parallel"),
            vmem_limit_bytes=vmem_limit,
        ),
        cost_estimate=cost,
    )(x)

    return out.reshape(B, C, out_h, out_w)                 # free view, no transpose


class Pooling:
    """Max Pooling (Pallas TPU port of the PyTorch module)."""

    def __init__(self, device, kernel, stride):
        del device                                         # JAX manages placement
        self.kernel = int(kernel)
        self.stride = int(stride)

    def __call__(self, x):
        return max_pool2d(x, self.kernel, self.stride)

    forward = __call__


def _reference_maxpool_nchw(x_nchw, kernel, stride):
    """Plain-JAX reference (lax.reduce_window) for correctness checking."""
    return lax.reduce_window(
        x_nchw,
        -jnp.inf if jnp.issubdtype(x_nchw.dtype, jnp.floating) else jnp.iinfo(x_nchw.dtype).min,
        lax.max,
        window_dimensions=(1, 1, kernel, kernel),
        window_strides=(1, 1, stride, stride),
        padding="VALID",
    )


if __name__ == "__main__":
    key = jax.random.PRNGKey(0)
    k0, k1, k2 = jax.random.split(key, 3)

    def check(x, kernel, stride, **kw):
        out = jax.block_until_ready(max_pool2d(x, kernel, stride, **kw))
        ref = _reference_maxpool_nchw(x, kernel, stride)
        assert out.shape == ref.shape, (out.shape, ref.shape)
        assert out.dtype == ref.dtype, (out.dtype, ref.dtype)
        assert jnp.allclose(out, ref), f"mismatch for kernel={kernel} stride={stride}"

    # Primary config: small Atari-DQN-style shapes, non-overlapping 2x2 pooling.
    B, C, H, W = 2, 4, 16, 16
    x = jax.random.normal(k0, (B, C, H, W), dtype=jnp.float32)
    pool = Pooling(device=None, kernel=2, stride=2)
    out = jax.block_until_ready(pool(x))
    ref = _reference_maxpool_nchw(x, 2, 2)
    assert out.shape == ref.shape and out.dtype == ref.dtype
    assert jnp.allclose(out, ref), "Pallas max-pool (2,2) mismatch vs reference"

    # Overlapping window (kernel > stride).
    check(x, 3, 2)
    # stride == 1 path (no lane compaction / scratch).
    check(x, 3, 1)
    # Odd spatial size (trailing row/col dropped by VALID pooling).
    x_odd = jax.random.normal(k1, (1, 3, 17, 17), dtype=jnp.float32)
    check(x_odd, 2, 2)
    # Blocked-H path with a partial last H tile (out_h=22, forced th_out=16).
    x_big = jax.random.normal(k2, (1, 2, 44, 44), dtype=jnp.float32)
    check(x_big, 2, 2, block_out_rows=16)

    print("KERNEL_OK")
</pallas_src>

<mosaic_0001>
module attributes {stable_mosaic.version = 11 : i64} {
  func.func @_maxpool_kernel(%arg0: i32, %arg1: i32, %arg2: memref<8x16x16xf32, #tpu.memory_space<vmem>>, %arg3: memref<8x8x8xf32, #tpu.memory_space<vmem>>, %arg4: memref<8x16x8xf32, #tpu.memory_space<vmem>>) attributes {dimension_semantics = [#tpu.dimension_semantics<parallel>, #tpu.dimension_semantics<parallel>], iteration_bounds = array<i64: 1, 1>, scalar_prefetch = 0 : i64, scratch_operands = 1 : i64, tpu.core_type = #tpu.core_type<tc>, window_params = [{transform_indices = @transform_0, window_bounds = array<i64: 8, 16, 16>}, {transform_indices = @transform_1, window_bounds = array<i64: 8, 8, 8>}]} {
    %c0 = arith.constant 0 : index
    %c0_0 = arith.constant 0 : index
    %c0_1 = arith.constant 0 : index
    %0 = tpu.strided_load %arg2[%c0, %c0_0, %c0_1] {strides = array<i32: 1, 2, 1>} : memref<8x16x16xf32, #tpu.memory_space<vmem>>, vector<8x8x16xf32>
    %c0_2 = arith.constant 0 : index
    %c1 = arith.constant 1 : index
    %c0_3 = arith.constant 0 : index
    %1 = tpu.strided_load %arg2[%c0_2, %c1, %c0_3] {strides = array<i32: 1, 2, 1>} : memref<8x16x16xf32, #tpu.memory_space<vmem>>, vector<8x8x16xf32>
    %2 = arith.maximumf %0, %1 : vector<8x8x16xf32>
    %3 = tpu.transpose %2, [0, 2, 1] : vector<8x8x16xf32> -> vector<8x16x8xf32>
    %c0_4 = arith.constant 0 : index
    %c0_5 = arith.constant 0 : index
    %c0_6 = arith.constant 0 : index
    %4 = vector.load %arg4[%c0_4, %c0_5, %c0_6] : memref<8x16x8xf32, #tpu.memory_space<vmem>>, vector<8x16x8xf32>
    tpu.vector_store %arg4[%c0_4, %c0_5, %c0_6], %3 {strides = array<i32>} : memref<8x16x8xf32, #tpu.memory_space<vmem>>, vector<8x16x8xf32>,
    %c0_7 = arith.constant 0 : index
    %c0_8 = arith.constant 0 : index
    %c0_9 = arith.constant 0 : index
    %5 = tpu.strided_load %arg4[%c0_7, %c0_8, %c0_9] {strides = array<i32: 1, 2, 1>} : memref<8x16x8xf32, #tpu.memory_space<vmem>>, vector<8x8x8xf32>
    %c0_10 = arith.constant 0 : index
    %c1_11 = arith.constant 1 : index
    %c0_12 = arith.constant 0 : index
    %6 = tpu.strided_load %arg4[%c0_10, %c1_11, %c0_12] {strides = array<i32: 1, 2, 1>} : memref<8x16x8xf32, #tpu.memory_space<vmem>>, vector<8x8x8xf32>
    %7 = arith.maximumf %5, %6 : vector<8x8x8xf32>
    %8 = tpu.transpose %7, [0, 2, 1] : vector<8x8x8xf32> -> vector<8x8x8xf32>
    %c0_13 = arith.constant 0 : index
    %c0_14 = arith.constant 0 : index
    %c0_15 = arith.constant 0 : index
    %9 = vector.load %arg3[%c0_13, %c0_14, %c0_15] : memref<8x8x8xf32, #tpu.memory_space<vmem>>, vector<8x8x8xf32>
    tpu.vector_store %arg3[%c0_13, %c0_14, %c0_15], %8 {strides = array<i32>} : memref<8x8x8xf32, #tpu.memory_space<vmem>>, vector<8x8x8xf32>,
    return
  }
  func.func @transform_0(%arg0: i32, %arg1: i32) -> (i32, i32, i32) {
    %c0_i32 = arith.constant 0 : i32
    %c0_i32_0 = arith.constant 0 : i32
    return %arg0, %arg1, %c0_i32 : i32, i32, i32
  }
  func.func @transform_1(%arg0: i32, %arg1: i32) -> (i32, i32, i32) {
    %c0_i32 = arith.constant 0 : i32
    %c0_i32_0 = arith.constant 0 : i32
    return %arg0, %arg1, %c0_i32 : i32, i32, i32
  }
}

</mosaic_0001>

<llo_original>
// kernel: tpu_custom_call.1
$region0: #{tpu_custom_call.1}
  #allocation0 [shape = 'u32[]', space=smem, size = 0x4, offset = 0x4, fixed_abs, tag = 'smem constant byte address 0x4 - core index']
  #allocation1 [shape = 'u32[144,128]{1,0:T(1,128)}', space=vmem, size = 0x12000, scoped, tag = 'internal scratch']
  #allocation2 [shape = 'f32[8,16,8]{2,1,0:T(8,128)}', space=vmem, size = 0x10000, scoped, tag = 'scratch operand']
  %s0 = inlined_call_operand.hbm [shape: f32[8,16,16], index: 0, kind: input, shape index: {}]
  %s1 = inlined_call_operand.hbm [shape: f32[8,8,8], index: 1, kind: output, shape index: {}]
  %s2 = sld [smem:[#allocation0]]
  $region18: #{tpu_custom_call.1} parent=0
    _
  %s4 = ssub.s32 1, %s2
  %s5 = scalar_select 0, %s4, %s2
  $region1: #{tpu_custom_call.1} parent=0
    #allocation3 [shape = 'u8[65536]{0}', space=vmem, size = 0x10000, scoped, tag = 'input window, operand 0, single buffered']
    #allocation4 [shape = 's32[1]{0}', space=sflag, size = 0x4, scoped, tag = 'scoped memory for tpu_custom_call.1']
    #allocation5 [shape = 's32[1]{0}', space=sflag, size = 0x4, scoped, tag = 'scoped memory for tpu_custom_call.1']
    #allocation6 [shape = 'u8[32768]{0}', space=vmem, size = 0x8000, scoped, tag = 'output window, operand 0, single buffered']
    %6 = vsyncpa [#allocation4], 0
    %7 = vsyncpa [#allocation5], 0
    // Predicated region
    $region2: #{tpu_custom_call.1} parent=1 // pred_check
      _
    $region3: #{tpu_custom_call.1} parent=1 // pred_check_branch
      %9 = sbr.rel (0) target = $region5
    $region4: #{tpu_custom_call.1} parent=1 // pred_region
      %s11 = ssub.s32 2048, 2048
      %12 = vsyncadd [#allocation4], %s11
      %s13 = sshll.u32 [#allocation3], 4
      %s14 = int_to_ptr.vmem [resolvable:$true] %s13
      %19 = dma.hbm_to_vmem [thread:$0]  %s0, 2048, %s14, [#allocation4], 128, 128, 8
    $region5: #{tpu_custom_call.1} parent=1 // pred_fallthru
      _
    // Predicated region
    $region6: #{tpu_custom_call.1} parent=1 // pred_check
      _
    $region7: #{tpu_custom_call.1} parent=1 // pred_check_branch
      %21 = sbr.rel (0) target = $region9
    $region8: #{tpu_custom_call.1} parent=1 // pred_region
      %22 = dma.done [#allocation4], 2048
    $region9: #{tpu_custom_call.1} parent=1 // pred_fallthru
      _
    %v23 = vld [vmem:[#allocation3] ss:$2 sm:$0xff]
    %s24 = scalar_lea.vmem [#allocation3], 16
    %v25 = vld [vmem:[%s24] ss:$2 sm:$0xff]
    %s26 = scalar_lea.vmem [#allocation3], 32
    %v27 = vld [vmem:[%s26] ss:$2 sm:$0xff]
    %s28 = scalar_lea.vmem [#allocation3], 48
    %v29 = vld [vmem:[%s28] ss:$2 sm:$0xff]
    %s30 = scalar_lea.vmem [#allocation3], 64
    %v31 = vld [vmem:[%s30] ss:$2 sm:$0xff]
    %s32 = scalar_lea.vmem [#allocation3], 80
    %v33 = vld [vmem:[%s32] ss:$2 sm:$0xff]
    %s34 = scalar_lea.vmem [#allocation3], 96
    %v35 = vld [vmem:[%s34] ss:$2 sm:$0xff]
    %s36 = scalar_lea.vmem [#allocation3], 112
    %v37 = vld [vmem:[%s36] ss:$2 sm:$0xff]
    %s38 = scalar_lea.vmem [#allocation3], 1
    %v39 = vld [vmem:[%s38] ss:$2 sm:$0xff]
    %s40 = scalar_lea.vmem [#allocation3], 17
    %v41 = vld [vmem:[%s40] ss:$2 sm:$0xff]
    %s42 = scalar_lea.vmem [#allocation3], 33
    %v43 = vld [vmem:[%s42] ss:$2 sm:$0xff]
    %s44 = scalar_lea.vmem [#allocation3], 49
    %v45 = vld [vmem:[%s44] ss:$2 sm:$0xff]
    %s46 = scalar_lea.vmem [#allocation3], 65
    %v47 = vld [vmem:[%s46] ss:$2 sm:$0xff]
    %s48 = scalar_lea.vmem [#allocation3], 81
    %v49 = vld [vmem:[%s48] ss:$2 sm:$0xff]
    %s50 = scalar_lea.vmem [#allocation3], 97
    %v51 = vld [vmem:[%s50] ss:$2 sm:$0xff]
    %s52 = scalar_lea.vmem [#allocation3], 113
    %v53 = vld [vmem:[%s52] ss:$2 sm:$0xff]
    %v54 = vmax.f32 %v23, %v39
    %v55 = vmax.f32 %v25, %v41
    %v56 = vmax.f32 %v27, %v43
    %v57 = vmax.f32 %v29, %v45
    %v58 = vmax.f32 %v31, %v47
    %v59 = vmax.f32 %v33, %v49
    %v60 = vmax.f32 %v35, %v51
    %v61 = vmax.f32 %v37, %v53
    %62 = vxpose.xlu0.b32.start [1/16] %v54, 128
    %63 = vxpose.xlu0.b32.cont [2/16] 0.0, 128
    %64 = vxpose.xlu0.b32.cont [3/16] 0.0, 128
    %65 = vxpose.xlu0.b32.cont [4/16] 0.0, 128
    %66 = vxpose.xlu0.b32.cont [5/16] 0.0, 128
    %67 = vxpose.xlu0.b32.cont [6/16] 0.0, 128
    %68 = vxpose.xlu0.b32.cont [7/16] 0.0, 128
    %69 = vxpose.xlu0.b32.cont [8/16] 0.0, 128
    %70 = vxpose.xlu0.b32.cont [9/16] 0.0, 128
    %71 = vxpose.xlu0.b32.cont [10/16] 0.0, 128
    %72 = vxpose.xlu0.b32.cont [11/16] 0.0, 128
    %73 = vxpose.xlu0.b32.cont [12/16] 0.0, 128
    %74 = vxpose.xlu0.b32.cont [13/16] 0.0, 128
    %75 = vxpose.xlu0.b32.cont [14/16] 0.0, 128
    %76 = vxpose.xlu0.b32.cont [15/16] 0.0, 128
    %77 = vxpose.xlu0.b32.end [16/16] 0.0, 128
    %v78 = vpop.trf.xlu0
    %v79 = vpop.trf.xlu0
    %v80 = vpop.trf.xlu0
    %v81 = vpop.trf.xlu0
    %v82 = vpop.trf.xlu0
    %v83 = vpop.trf.xlu0
    %v84 = vpop.trf.xlu0
    %v85 = vpop.trf.xlu0
    %v86 = vpop.trf.xlu0
    %v87 = vpop.trf.xlu0
    %v88 = vpop.trf.xlu0
    %v89 = vpop.trf.xlu0
    %v90 = vpop.trf.xlu0
    %v91 = vpop.trf.xlu0
    %v92 = vpop.trf.xlu0
    %v93 = vpop.trf.xlu0
    %94 = vxpose.xlu0.b32.start [1/16] %v55, 128
    %95 = vxpose.xlu0.b32.cont [2/16] 0.0, 128
    %96 = vxpose.xlu0.b32.cont [3/16] 0.0, 128
    %97 = vxpose.xlu0.b32.cont [4/16] 0.0, 128
    %98 = vxpose.xlu0.b32.cont [5/16] 0.0, 128
    %99 = vxpose.xlu0.b32.cont [6/16] 0.0, 128
    %100 = vxpose.xlu0.b32.cont [7/16] 0.0, 128
    %101 = vxpose.xlu0.b32.cont [8/16] 0.0, 128
    %102 = vxpose.xlu0.b32.cont [9/16] 0.0, 128
    %103 = vxpose.xlu0.b32.cont [10/16] 0.0, 128
    %104 = vxpose.xlu0.b32.cont [11/16] 0.0, 128
    %105 = vxpose.xlu0.b32.cont [12/16] 0.0, 128
    %106 = vxpose.xlu0.b32.cont [13/16] 0.0, 128
    %107 = vxpose.xlu0.b32.cont [14/16] 0.0, 128
    %108 = vxpose.xlu0.b32.cont [15/16] 0.0, 128
    %109 = vxpose.xlu0.b32.end [16/16] 0.0, 128
    %v110 = vpop.trf.xlu0
    %v111 = vpop.trf.xlu0
    %v112 = vpop.trf.xlu0
    %v113 = vpop.trf.xlu0
    %v114 = vpop.trf.xlu0
    %v115 = vpop.trf.xlu0
    %v116 = vpop.trf.xlu0
    %v117 = vpop.trf.xlu0
    %v118 = vpop.trf.xlu0
    %v119 = vpop.trf.xlu0
    %v120 = vpop.trf.xlu0
    %v121 = vpop.trf.xlu0
    %v122 = vpop.trf.xlu0
    %v123 = vpop.trf.xlu0
    %v124 = vpop.trf.xlu0
    %v125 = vpop.trf.xlu0
    %126 = vxpose.xlu0.b32.start [1/16] %v56, 128
    %127 = vxpose.xlu0.b32.cont [2/16] 0.0, 128
    %128 = vxpose.xlu0.b32.cont [3/16] 0.0, 128
    %129 = vxpose.xlu0.b32.cont [4/16] 0.0, 128
    %130 = vxpose.xlu0.b32.cont [5/16] 0.0, 128
    %131 = vxpose.xlu0.b32.cont [6/16] 0.0, 128
    %132 = vxpose.xlu0.b32.cont [7/16] 0.0, 128
    %133 = vxpose.xlu0.b32.cont [8/16] 0.0, 128
    %134 = vxpose.xlu0.b32.cont [9/16] 0.0, 128
    %135 = vxpose.xlu0.b32.cont [10/16] 0.0, 128
    %136 = vxpose.xlu0.b32.cont [11/16] 0.0, 128
    %137 = vxpose.xlu0.b32.cont [12/16] 0.0, 128
    %138 = vxpose.xlu0.b32.cont [13/16] 0.0, 128
    %139 = vxpose.xlu0.b32.cont [14/16] 0.0, 128
    %140 = vxpose.xlu0.b32.cont [15/16] 0.0, 128
    %141 = vxpose.xlu0.b32.end [16/16] 0.0, 128
    %v142 = vpop.trf.xlu0
    %v143 = vpop.trf.xlu0
    %v144 = vpop.trf.xlu0
    %v145 = vpop.trf.xlu0
    %v146 = vpop.trf.xlu0
    %v147 = vpop.trf.xlu0
    %v148 = vpop.trf.xlu0
    %v149 = vpop.trf.xlu0
    %v150 = vpop.trf.xlu0
    %v151 = vpop.trf.xlu0
    %v152 = vpop.trf.xlu0
    %v153 = vpop.trf.xlu0
    %v154 = vpop.trf.xlu0
    %v155 = vpop.trf.xlu0
    %v156 = vpop.trf.xlu0
    %v157 = vpop.trf.xlu0
    %158 = vxpose.xlu0.b32.start [1/16] %v57, 128
    %159 = vxpose.xlu0.b32.cont [2/16] 0.0, 128
    %160 = vxpose.xlu0.b32.cont [3/16] 0.0, 128
    %161 = vxpose.xlu0.b32.cont [4/16] 0.0, 128
    %162 = vxpose.xlu0.b32.cont [5/16] 0.0, 128
    %163 = vxpose.xlu0.b32.cont [6/16] 0.0, 128
    %164 = vxpose.xlu0.b32.cont [7/16] 0.0, 128
    %165 = vxpose.xlu0.b32.cont [8/16] 0.0, 128
    %166 = vxpose.xlu0.b32.cont [9/16] 0.0, 128
    %167 = vxpose.xlu0.b32.cont [10/16] 0.0, 128
    %168 = vxpose.xlu0.b32.cont [11/16] 0.0, 128
    %169 = vxpose.xlu0.b32.cont [12/16] 0.0, 128
    %170 = vxpose.xlu0.b32.cont [13/16] 0.0, 128
    %171 = vxpose.xlu0.b32.cont [14/16] 0.0, 128
    %172 = vxpose.xlu0.b32.cont [15/16] 0.0, 128
    %173 = vxpose.xlu0.b32.end [16/16] 0.0, 128
    %v174 = vpop.trf.xlu0
    %v175 = vpop.trf.xlu0
    %v176 = vpop.trf.xlu0
    %v177 = vpop.trf.xlu0
    %v178 = vpop.trf.xlu0
    %v179 = vpop.trf.xlu0
    %v180 = vpop.trf.xlu0
    %v181 = vpop.trf.xlu0
    %v182 = vpop.trf.xlu0
    %v183 = vpop.trf.xlu0
    %v184 = vpop.trf.xlu0
    %v185 = vpop.trf.xlu0
    %v186 = vpop.trf.xlu0
    %v187 = vpop.trf.xlu0
    %v188 = vpop.trf.xlu0
    %v189 = vpop.trf.xlu0
    %190 = vxpose.xlu0.b32.start [1/16] %v58, 128
    %191 = vxpose.xlu0.b32.cont [2/16] 0.0, 128
    %192 = vxpose.xlu0.b32.cont [3/16] 0.0, 128
    %193 = vxpose.xlu0.b32.cont [4/16] 0.0, 128
    %194 = vxpose.xlu0.b32.cont [5/16] 0.0, 128
    %195 = vxpose.xlu0.b32.cont [6/16] 0.0, 128
    %196 = vxpose.xlu0.b32.cont [7/16] 0.0, 128
    %197 = vxpose.xlu0.b32.cont [8/16] 0.0, 128
    %198 = vxpose.xlu0.b32.cont [9/16] 0.0, 128
    %199 = vxpose.xlu0.b32.cont [10/16] 0.0, 128
    %200 = vxpose.xlu0.b32.cont [11/16] 0.0, 128
    %201 = vxpose.xlu0.b32.cont [12/16] 0.0, 128
    %202 = vxpose.xlu0.b32.cont [13/16] 0.0, 128
    %203 = vxpose.xlu0.b32.cont [14/16] 0.0, 128
    %204 = vxpose.xlu0.b32.cont [15/16] 0.0, 128
    %205 = vxpose.xlu0.b32.end [16/16] 0.0, 128
    %v206 = vpop.trf.xlu0
    %v207 = vpop.trf.xlu0
    %v208 = vpop.trf.xlu0
    %v209 = vpop.trf.xlu0
    %v210 = vpop.trf.xlu0
    %v211 = vpop.trf.xlu0
    %v212 = vpop.trf.xlu0
    %v213 = vpop.trf.xlu0
    %v214 = vpop.trf.xlu0
    %v215 = vpop.trf.xlu0
    %v216 = vpop.trf.xlu0
    %v217 = vpop.trf.xlu0
    %v218 = vpop.trf.xlu0
    %v219 = vpop.trf.xlu0
    %v220 = vpop.trf.xlu0
    %v221 = vpop.trf.xlu0
    %222 = vxpose.xlu0.b32.start [1/16] %v59, 128
    %223 = vxpose.xlu0.b32.cont [2/16] 0.0, 128
    %224 = vxpose.xlu0.b32.cont [3/16] 0.0, 128
    %225 = vxpose.xlu0.b32.cont [4/16] 0.0, 128
    %226 = vxpose.xlu0.b32.cont [5/16] 0.0, 128
    %227 = vxpose.xlu0.b32.cont [6/16] 0.0, 128
    %228 = vxpose.xlu0.b32.cont [7/16] 0.0, 128
    %229 = vxpose.xlu0.b32.cont [8/16] 0.0, 128
    %230 = vxpose.xlu0.b32.cont [9/16] 0.0, 128
    %231 = vxpose.xlu0.b32.cont [10/16] 0.0, 128
    %232 = vxpose.xlu0.b32.cont [11/16] 0.0, 128
    %233 = vxpose.xlu0.b32.cont [12/16] 0.0, 128
    %234 = vxpose.xlu0.b32.cont [13/16] 0.0, 128
    %235 = vxpose.xlu0.b32.cont [14/16] 0.0, 128
    %236 = vxpose.xlu0.b32.cont [15/16] 0.0, 128
    %237 = vxpose.xlu0.b32.end [16/16] 0.0, 128
    %v238 = vpop.trf.xlu0
    %v239 = vpop.trf.xlu0
    %v240 = vpop.trf.xlu0
    %v241 = vpop.trf.xlu0
    %v242 = vpop.trf.xlu0
    %v243 = vpop.trf.xlu0
    %v244 = vpop.trf.xlu0
    %v245 = vpop.trf.xlu0
    %v246 = vpop.trf.xlu0
    %v247 = vpop.trf.xlu0
    %v248 = vpop.trf.xlu0
    %v249 = vpop.trf.xlu0
    %v250 = vpop.trf.xlu0
    %v251 = vpop.trf.xlu0
    %v252 = vpop.trf.xlu0
    %v253 = vpop.trf.xlu0
    %254 = vxpose.xlu0.b32.start [1/16] %v60, 128
    %255 = vxpose.xlu0.b32.cont [2/16] 0.0, 128
    %256 = vxpose.xlu0.b32.cont [3/16] 0.0, 128
    %257 = vxpose.xlu0.b32.cont [4/16] 0.0, 128
    %258 = vxpose.xlu0.b32.cont [5/16] 0.0, 128
    %259 = vxpose.xlu0.b32.cont [6/16] 0.0, 128
    %260 = vxpose.xlu0.b32.cont [7/16] 0.0, 128
    %261 = vxpose.xlu0.b32.cont [8/16] 0.0, 128
    %262 = vxpose.xlu0.b32.cont [9/16] 0.0, 128
    %263 = vxpose.xlu0.b32.cont [10/16] 0.0, 128
    %264 = vxpose.xlu0.b32.cont [11/16] 0.0, 128
    %265 = vxpose.xlu0.b32.cont [12/16] 0.0, 128
    %266 = vxpose.xlu0.b32.cont [13/16] 0.0, 128
    %267 = vxpose.xlu0.b32.cont [14/16] 0.0, 128
    %268 = vxpose.xlu0.b32.cont [15/16] 0.0, 128
    %269 = vxpose.xlu0.b32.end [16/16] 0.0, 128
    %v270 = vpop.trf.xlu0
    %v271 = vpop.trf.xlu0
    %v272 = vpop.trf.xlu0
    %v273 = vpop.trf.xlu0
    %v274 = vpop.trf.xlu0
    %v275 = vpop.trf.xlu0
    %v276 = vpop.trf.xlu0
    %v277 = vpop.trf.xlu0
    %v278 = vpop.trf.xlu0
    %v279 = vpop.trf.xlu0
    %v280 = vpop.trf.xlu0
    %v281 = vpop.trf.xlu0
    %v282 = vpop.trf.xlu0
    %v283 = vpop.trf.xlu0
    %v284 = vpop.trf.xlu0
    %v285 = vpop.trf.xlu0
    %286 = vxpose.xlu0.b32.start [1/16] %v61, 128
    %287 = vxpose.xlu0.b32.cont [2/16] 0.0, 128
    %288 = vxpose.xlu0.b32.cont [3/16] 0.0, 128
    %289 = vxpose.xlu0.b32.cont [4/16] 0.0, 128
    %290 = vxpose.xlu0.b32.cont [5/16] 0.0, 128
    %291 = vxpose.xlu0.b32.cont [6/16] 0.0, 128
    %292 = vxpose.xlu0.b32.cont [7/16] 0.0, 128
    %293 = vxpose.xlu0.b32.cont [8/16] 0.0, 128
    %294 = vxpose.xlu0.b32.cont [9/16] 0.0, 128
    %295 = vxpose.xlu0.b32.cont [10/16] 0.0, 128
    %296 = vxpose.xlu0.b32.cont [11/16] 0.0, 128
    %297 = vxpose.xlu0.b32.cont [12/16] 0.0, 128
    %298 = vxpose.xlu0.b32.cont [13/16] 0.0, 128
    %299 = vxpose.xlu0.b32.cont [14/16] 0.0, 128
    %300 = vxpose.xlu0.b32.cont [15/16] 0.0, 128
    %301 = vxpose.xlu0.b32.end [16/16] 0.0, 128
    %v302 = vpop.trf.xlu0
    %v303 = vpop.trf.xlu0
    %v304 = vpop.trf.xlu0
    %v305 = vpop.trf.xlu0
    %v306 = vpop.trf.xlu0
    %v307 = vpop.trf.xlu0
    %v308 = vpop.trf.xlu0
    %v309 = vpop.trf.xlu0
    %v310 = vpop.trf.xlu0
    %v311 = vpop.trf.xlu0
    %v312 = vpop.trf.xlu0
    %v313 = vpop.trf.xlu0
    %v314 = vpop.trf.xlu0
    %v315 = vpop.trf.xlu0
    %v316 = vpop.trf.xlu0
    %v317 = vpop.trf.xlu0
    %vm318 = vcmask 64512
    %319 = vst.msk [vmem:[#allocation2] sm:$0xff] %vm318, %v78
    %320 = vst.msk [vmem:[#allocation2 + $0x8] sm:$0xff] %vm318, %v79
    %321 = vst.msk [vmem:[#allocation2 + $0x10] sm:$0xff] %vm318, %v110
    %322 = vst.msk [vmem:[#allocation2 + $0x18] sm:$0xff] %vm318, %v111
    %323 = vst.msk [vmem:[#allocation2 + $0x20] sm:$0xff] %vm318, %v142
    %324 = vst.msk [vmem:[#allocation2 + $0x28] sm:$0xff] %vm318, %v143
    %325 = vst.msk [vmem:[#allocation2 + $0x30] sm:$0xff] %vm318, %v174
    %326 = vst.msk [vmem:[#allocation2 + $0x38] sm:$0xff] %vm318, %v175
    %327 = vst.msk [vmem:[#allocation2 + $0x40] sm:$0xff] %vm318, %v206
    %328 = vst.msk [vmem:[#allocation2 + $0x48] sm:$0xff] %vm318, %v207
    %329 = vst.msk [vmem:[#allocation2 + $0x50] sm:$0xff] %vm318, %v238
    %330 = vst.msk [vmem:[#allocation2 + $0x58] sm:$0xff] %vm318, %v239
    %331 = vst.msk [vmem:[#allocation2 + $0x60] sm:$0xff] %vm318, %v270
    %332 = vst.msk [vmem:[#allocation2 + $0x68] sm:$0xff] %vm318, %v271
    %333 = vst.msk [vmem:[#allocation2 + $0x70] sm:$0xff] %vm318, %v302
    %334 = vst.msk [vmem:[#allocation2 + $0x78] sm:$0xff] %vm318, %v303
    %v335 = vld [vmem:[#allocation2] ss:$2 sm:$0xff]
    %s336 = scalar_lea.vmem [#allocation2], 16
    %v337 = vld [vmem:[%s336] ss:$2 sm:$0xff]
    %s338 = scalar_lea.vmem [#allocation2], 32
    %v339 = vld [vmem:[%s338] ss:$2 sm:$0xff]
    %s340 = scalar_lea.vmem [#allocation2], 48
    %v341 = vld [vmem:[%s340] ss:$2 sm:$0xff]
    %s342 = scalar_lea.vmem [#allocation2], 64
    %v343 = vld [vmem:[%s342] ss:$2 sm:$0xff]
    %s344 = scalar_lea.vmem [#allocation2], 80
    %v345 = vld [vmem:[%s344] ss:$2 sm:$0xff]
    %s346 = scalar_lea.vmem [#allocation2], 96
    %v347 = vld [vmem:[%s346] ss:$2 sm:$0xff]
    %s348 = scalar_lea.vmem [#allocation2], 112
    %v349 = vld [vmem:[%s348] ss:$2 sm:$0xff]
    %s350 = scalar_lea.vmem [#allocation2], 1
    %v351 = vld [vmem:[%s350] ss:$2 sm:$0xff]
    %s352 = scalar_lea.vmem [#allocation2], 17
    %v353 = vld [vmem:[%s352] ss:$2 sm:$0xff]
    %s354 = scalar_lea.vmem [#allocation2], 33
    %v355 = vld [vmem:[%s354] ss:$2 sm:$0xff]
    %s356 = scalar_lea.vmem [#allocation2], 49
    %v357 = vld [vmem:[%s356] ss:$2 sm:$0xff]
    %s358 = scalar_lea.vmem [#allocation2], 65
    %v359 = vld [vmem:[%s358] ss:$2 sm:$0xff]
    %s360 = scalar_lea.vmem [#allocation2], 81
    %v361 = vld [vmem:[%s360] ss:$2 sm:$0xff]
    %s362 = scalar_lea.vmem [#allocation2], 97
    %v363 = vld [vmem:[%s362] ss:$2 sm:$0xff]
    %s364 = scalar_lea.vmem [#allocation2], 113
    %v365 = vld [vmem:[%s364] ss:$2 sm:$0xff]
    %v366 = vmax.f32 %v335, %v351
    %v367 = vmax.f32 %v337, %v353
    %v368 = vmax.f32 %v339, %v355
    %v369 = vmax.f32 %v341, %v357
    %v370 = vmax.f32 %v343, %v359
    %v371 = vmax.f32 %v345, %v361
    %v372 = vmax.f32 %v347, %v363
    %v373 = vmax.f32 %v349, %v365
    %374 = vxpose.xlu0.b32.start [1/16] %v366, 128
    %375 = vxpose.xlu0.b32.cont [2/16] 0.0, 128
    %376 = vxpose.xlu0.b32.cont [3/16] 0.0, 128
    %377 = vxpose.xlu0.b32.cont [4/16] 0.0, 128
    %378 = vxpose.xlu0.b32.cont [5/16] 0.0, 128
    %379 = vxpose.xlu0.b32.cont [6/16] 0.0, 128
    %380 = vxpose.xlu0.b32.cont [7/16] 0.0, 128
    %381 = vxpose.xlu0.b32.cont [8/16] 0.0, 128
    %382 = vxpose.xlu0.b32.cont [9/16] 0.0, 128
    %383 = vxpose.xlu0.b32.cont [10/16] 0.0, 128
    %384 = vxpose.xlu0.b32.cont [11/16] 0.0, 128
    %385 = vxpose.xlu0.b32.cont [12/16] 0.0, 128
    %386 = vxpose.xlu0.b32.cont [13/16] 0.0, 128
    %387 = vxpose.xlu0.b32.cont [14/16] 0.0, 128
    %388 = vxpose.xlu0.b32.cont [15/16] 0.0, 128
    %389 = vxpose.xlu0.b32.end [16/16] 0.0, 128
    %v390 = vpop.trf.xlu0
    %v391 = vpop.trf.xlu0
    %v392 = vpop.trf.xlu0
    %v393 = vpop.trf.xlu0
    %v394 = vpop.trf.xlu0
    %v395 = vpop.trf.xlu0
    %v396 = vpop.trf.xlu0
    %v397 = vpop.trf.xlu0
    %v398 = vpop.trf.xlu0
    %v399 = vpop.trf.xlu0
    %v400 = vpop.trf.xlu0
    %v401 = vpop.trf.xlu0
    %v402 = vpop.trf.xlu0
    %v403 = vpop.trf.xlu0
    %v404 = vpop.trf.xlu0
    %v405 = vpop.trf.xlu0
    %406 = vxpose.xlu0.b32.start [1/16] %v367, 128
    %407 = vxpose.xlu0.b32.cont [2/16] 0.0, 128
    %408 = vxpose.xlu0.b32.cont [3/16] 0.0, 128
    %409 = vxpose.xlu0.b32.cont [4/16] 0.0, 128
    %410 = vxpose.xlu0.b32.cont [5/16] 0.0, 128
    %411 = vxpose.xlu0.b32.cont [6/16] 0.0, 128
    %412 = vxpose.xlu0.b32.cont [7/16] 0.0, 128
    %413 = vxpose.xlu0.b32.cont [8/16] 0.0, 128
    %414 = vxpose.xlu0.b32.cont [9/16] 0.0, 128
    %415 = vxpose.xlu0.b32.cont [10/16] 0.0, 128
    %416 = vxpose.xlu0.b32.cont [11/16] 0.0, 128
    %417 = vxpose.xlu0.b32.cont [12/16] 0.0, 128
    %418 = vxpose.xlu0.b32.cont [13/16] 0.0, 128
    %419 = vxpose.xlu0.b32.cont [14/16] 0.0, 128
    %420 = vxpose.xlu0.b32.cont [15/16] 0.0, 128
    %421 = vxpose.xlu0.b32.end [16/16] 0.0, 128
    %v422 = vpop.trf.xlu0
    %v423 = vpop.trf.xlu0
    %v424 = vpop.trf.xlu0
    %v425 = vpop.trf.xlu0
    %v426 = vpop.trf.xlu0
    %v427 = vpop.trf.xlu0
    %v428 = vpop.trf.xlu0
    %v429 = vpop.trf.xlu0
    %v430 = vpop.trf.xlu0
    %v431 = vpop.trf.xlu0
    %v432 = vpop.trf.xlu0
    %v433 = vpop.trf.xlu0
    %v434 = vpop.trf.xlu0
    %v435 = vpop.trf.xlu0
    %v436 = vpop.trf.xlu0
    %v437 = vpop.trf.xlu0
    %438 = vxpose.xlu0.b32.start [1/16] %v368, 128
    %439 = vxpose.xlu0.b32.cont [2/16] 0.0, 128
    %440 = vxpose.xlu0.b32.cont [3/16] 0.0, 128
    %441 = vxpose.xlu0.b32.cont [4/16] 0.0, 128
    %442 = vxpose.xlu0.b32.cont [5/16] 0.0, 128
    %443 = vxpose.xlu0.b32.cont [6/16] 0.0, 128
    %444 = vxpose.xlu0.b32.cont [7/16] 0.0, 128
    %445 = vxpose.xlu0.b32.cont [8/16] 0.0, 128
    %446 = vxpose.xlu0.b32.cont [9/16] 0.0, 128
    %447 = vxpose.xlu0.b32.cont [10/16] 0.0, 128
    %448 = vxpose.xlu0.b32.cont [11/16] 0.0, 128
    %449 = vxpose.xlu0.b32.cont [12/16] 0.0, 128
    %450 = vxpose.xlu0.b32.cont [13/16] 0.0, 128
    %451 = vxpose.xlu0.b32.cont [14/16] 0.0, 128
    %452 = vxpose.xlu0.b32.cont [15/16] 0.0, 128
    %453 = vxpose.xlu0.b32.end [16/16] 0.0, 128
    %v454 = vpop.trf.xlu0
    %v455 = vpop.trf.xlu0
    %v456 = vpop.trf.xlu0
    %v457 = vpop.trf.xlu0
    %v458 = vpop.trf.xlu0
    %v459 = vpop.trf.xlu0
    %v460 = vpop.trf.xlu0
    %v461 = vpop.trf.xlu0
    %v462 = vpop.trf.xlu0
    %v463 = vpop.trf.xlu0
    %v464 = vpop.trf.xlu0
    %v465 = vpop.trf.xlu0
    %v466 = vpop.trf.xlu0
    %v467 = vpop.trf.xlu0
    %v468 = vpop.trf.xlu0
    %v469 = vpop.trf.xlu0
    %470 = vxpose.xlu0.b32.start [1/16] %v369, 128
    %471 = vxpose.xlu0.b32.cont [2/16] 0.0, 128
    %472 = vxpose.xlu0.b32.cont [3/16] 0.0, 128
    %473 = vxpose.xlu0.b32.cont [4/16] 0.0, 128
    %474 = vxpose.xlu0.b32.cont [5/16] 0.0, 128
    %475 = vxpose.xlu0.b32.cont [6/16] 0.0, 128
    %476 = vxpose.xlu0.b32.cont [7/16] 0.0, 128
    %477 = vxpose.xlu0.b32.cont [8/16] 0.0, 128
    %478 = vxpose.xlu0.b32.cont [9/16] 0.0, 128
    %479 = vxpose.xlu0.b32.cont [10/16] 0.0, 128
    %480 = vxpose.xlu0.b32.cont [11/16] 0.0, 128
    %481 = vxpose.xlu0.b32.cont [12/16] 0.0, 128
    %482 = vxpose.xlu0.b32.cont [13/16] 0.0, 128
    %483 = vxpose.xlu0.b32.cont [14/16] 0.0, 128
    %484 = vxpose.xlu0.b32.cont [15/16] 0.0, 128
    %485 = vxpose.xlu0.b32.end [16/16] 0.0, 128
    %v486 = vpop.trf.xlu0
    %v487 = vpop.trf.xlu0
    %v488 = vpop.trf.xlu0
    %v489 = vpop.trf.xlu0
    %v490 = vpop.trf.xlu0
    %v491 = vpop.trf.xlu0
    %v492 = vpop.trf.xlu0
    %v493 = vpop.trf.xlu0
    %v494 = vpop.trf.xlu0
    %v495 = vpop.trf.xlu0
    %v496 = vpop.trf.xlu0
    %v497 = vpop.trf.xlu0
    %v498 = vpop.trf.xlu0
    %v499 = vpop.trf.xlu0
    %v500 = vpop.trf.xlu0
    %v501 = vpop.trf.xlu0
    %502 = vxpose.xlu0.b32.start [1/16] %v370, 128
    %503 = vxpose.xlu0.b32.cont [2/16] 0.0, 128
    %504 = vxpose.xlu0.b32.cont [3/16] 0.0, 128
    %505 = vxpose.xlu0.b32.cont [4/16] 0.0, 128
    %506 = vxpose.xlu0.b32.cont [5/16] 0.0, 128
    %507 = vxpose.xlu0.b32.cont [6/16] 0.0, 128
    %508 = vxpose.xlu0.b32.cont [7/16] 0.0, 128
    %509 = vxpose.xlu0.b32.cont [8/16] 0.0, 128
    %510 = vxpose.xlu0.b32.cont [9/16] 0.0, 128
    %511 = vxpose.xlu0.b32.cont [10/16] 0.0, 128
    %512 = vxpose.xlu0.b32.cont [11/16] 0.0, 128
    %513 = vxpose.xlu0.b32.cont [12/16] 0.0, 128
    %514 = vxpose.xlu0.b32.cont [13/16] 0.0, 128
    %515 = vxpose.xlu0.b32.cont [14/16] 0.0, 128
    %516 = vxpose.xlu0.b32.cont [15/16] 0.0, 128
    %517 = vxpose.xlu0.b32.end [16/16] 0.0, 128
    %v518 = vpop.trf.xlu0
    %v519 = vpop.trf.xlu0
    %v520 = vpop.trf.xlu0
    %v521 = vpop.trf.xlu0
    %v522 = vpop.trf.xlu0
    %v523 = vpop.trf.xlu0
    %v524 = vpop.trf.xlu0
    %v525 = vpop.trf.xlu0
    %v526 = vpop.trf.xlu0
    %v527 = vpop.trf.xlu0
    %v528 = vpop.trf.xlu0
    %v529 = vpop.trf.xlu0
    %v530 = vpop.trf.xlu0
    %v531 = vpop.trf.xlu0
    %v532 = vpop.trf.xlu0
    %v533 = vpop.trf.xlu0
    %534 = vxpose.xlu0.b32.start [1/16] %v371, 128
    %535 = vxpose.xlu0.b32.cont [2/16] 0.0, 128
    %536 = vxpose.xlu0.b32.cont [3/16] 0.0, 128
    %537 = vxpose.xlu0.b32.cont [4/16] 0.0, 128
    %538 = vxpose.xlu0.b32.cont [5/16] 0.0, 128
    %539 = vxpose.xlu0.b32.cont [6/16] 0.0, 128
    %540 = vxpose.xlu0.b32.cont [7/16] 0.0, 128
    %541 = vxpose.xlu0.b32.cont [8/16] 0.0, 128
    %542 = vxpose.xlu0.b32.cont [9/16] 0.0, 128
    %543 = vxpose.xlu0.b32.cont [10/16] 0.0, 128
    %544 = vxpose.xlu0.b32.cont [11/16] 0.0, 128
    %545 = vxpose.xlu0.b32.cont [12/16] 0.0, 128
    %546 = vxpose.xlu0.b32.cont [13/16] 0.0, 128
    %547 = vxpose.xlu0.b32.cont [14/16] 0.0, 128
    %548 = vxpose.xlu0.b32.cont [15/16] 0.0, 128
    %549 = vxpose.xlu0.b32.end [16/16] 0.0, 128
    %v550 = vpop.trf.xlu0
    %v551 = vpop.trf.xlu0
    %v552 = vpop.trf.xlu0
    %v553 = vpop.trf.xlu0
    %v554 = vpop.trf.xlu0
    %v555 = vpop.trf.xlu0
    %v556 = vpop.trf.xlu0
    %v557 = vpop.trf.xlu0
    %v558 = vpop.trf.xlu0
    %v559 = vpop.trf.xlu0
    %v560 = vpop.trf.xlu0
    %v561 = vpop.trf.xlu0
    %v562 = vpop.trf.xlu0
    %v563 = vpop.trf.xlu0
    %v564 = vpop.trf.xlu0
    %v565 = vpop.trf.xlu0
    %566 = vxpose.xlu0.b32.start [1/16] %v372, 128
    %567 = vxpose.xlu0.b32.cont [2/16] 0.0, 128
    %568 = vxpose.xlu0.b32.cont [3/16] 0.0, 128
    %569 = vxpose.xlu0.b32.cont [4/16] 0.0, 128
    %570 = vxpose.xlu0.b32.cont [5/16] 0.0, 128
    %571 = vxpose.xlu0.b32.cont [6/16] 0.0, 128
    %572 = vxpose.xlu0.b32.cont [7/16] 0.0, 128
    %573 = vxpose.xlu0.b32.cont [8/16] 0.0, 128
    %574 = vxpose.xlu0.b32.cont [9/16] 0.0, 128
    %575 = vxpose.xlu0.b32.cont [10/16] 0.0, 128
    %576 = vxpose.xlu0.b32.cont [11/16] 0.0, 128
    %577 = vxpose.xlu0.b32.cont [12/16] 0.0, 128
    %578 = vxpose.xlu0.b32.cont [13/16] 0.0, 128
    %579 = vxpose.xlu0.b32.cont [14/16] 0.0, 128
    %580 = vxpose.xlu0.b32.cont [15/16] 0.0, 128
    %581 = vxpose.xlu0.b32.end [16/16] 0.0, 128
    %v582 = vpop.trf.xlu0
    %v583 = vpop.trf.xlu0
    %v584 = vpop.trf.xlu0
    %v585 = vpop.trf.xlu0
    %v586 = vpop.trf.xlu0
    %v587 = vpop.trf.xlu0
    %v588 = vpop.trf.xlu0
    %v589 = vpop.trf.xlu0
    %v590 = vpop.trf.xlu0
    %v591 = vpop.trf.xlu0
    %v592 = vpop.trf.xlu0
    %v593 = vpop.trf.xlu0
    %v594 = vpop.trf.xlu0
    %v595 = vpop.trf.xlu0
    %v596 = vpop.trf.xlu0
    %v597 = vpop.trf.xlu0
    %598 = vxpose.xlu0.b32.start [1/16] %v373, 128
    %599 = vxpose.xlu0.b32.cont [2/16] 0.0, 128
    %600 = vxpose.xlu0.b32.cont [3/16] 0.0, 128
    %601 = vxpose.xlu0.b32.cont [4/16] 0.0, 128
    %602 = vxpose.xlu0.b32.cont [5/16] 0.0, 128
    %603 = vxpose.xlu0.b32.cont [6/16] 0.0, 128
    %604 = vxpose.xlu0.b32.cont [7/16] 0.0, 128
    %605 = vxpose.xlu0.b32.cont [8/16] 0.0, 128
    %606 = vxpose.xlu0.b32.cont [9/16] 0.0, 128
    %607 = vxpose.xlu0.b32.cont [10/16] 0.0, 128
    %608 = vxpose.xlu0.b32.cont [11/16] 0.0, 128
    %609 = vxpose.xlu0.b32.cont [12/16] 0.0, 128
    %610 = vxpose.xlu0.b32.cont [13/16] 0.0, 128
    %611 = vxpose.xlu0.b32.cont [14/16] 0.0, 128
    %612 = vxpose.xlu0.b32.cont [15/16] 0.0, 128
    %613 = vxpose.xlu0.b32.end [16/16] 0.0, 128
    %v614 = vpop.trf.xlu0
    %v615 = vpop.trf.xlu0
    %v616 = vpop.trf.xlu0
    %v617 = vpop.trf.xlu0
    %v618 = vpop.trf.xlu0
    %v619 = vpop.trf.xlu0
    %v620 = vpop.trf.xlu0
    %v621 = vpop.trf.xlu0
    %v622 = vpop.trf.xlu0
    %v623 = vpop.trf.xlu0
    %v624 = vpop.trf.xlu0
    %v625 = vpop.trf.xlu0
    %v626 = vpop.trf.xlu0
    %v627 = vpop.trf.xlu0
    %v628 = vpop.trf.xlu0
    %v629 = vpop.trf.xlu0
    %630 = vst.msk [vmem:[#allocation6] sm:$0xff] %vm318, %v390
    %631 = vst.msk [vmem:[#allocation6 + $0x8] sm:$0xff] %vm318, %v422
    %632 = vst.msk [vmem:[#allocation6 + $0x10] sm:$0xff] %vm318, %v454
    %633 = vst.msk [vmem:[#allocation6 + $0x18] sm:$0xff] %vm318, %v486
    %634 = vst.msk [vmem:[#allocation6 + $0x20] sm:$0xff] %vm318, %v518
    %635 = vst.msk [vmem:[#allocation6 + $0x28] sm:$0xff] %vm318, %v550
    %636 = vst.msk [vmem:[#allocation6 + $0x30] sm:$0xff] %vm318, %v582
    %637 = vst.msk [vmem:[#allocation6 + $0x38] sm:$0xff] %vm318, %v614
    // Predicated region
    $region10: #{tpu_custom_call.1} parent=1 // pred_check
      _
    $region11: #{tpu_custom_call.1} parent=1 // pred_check_branch
      %639 = sbr.rel (0) target = $region13
    $region12: #{tpu_custom_call.1} parent=1 // pred_region
      %s641 = ssub.s32 1024, 1024
      %642 = vsyncadd [#allocation5], %s641
      %s643 = sshll.u32 [#allocation6], 4
      %s644 = int_to_ptr.vmem [resolvable:$true] %s643
      %649 = dma.vmem_to_hbm [thread:$0]  %s644, 1024, %s1, [#allocation5], 128, 128, 8
    $region13: #{tpu_custom_call.1} parent=1 // pred_fallthru
      _
    // Predicated region
    $region14: #{tpu_custom_call.1} parent=1 // pred_check
      _
    $region15: #{tpu_custom_call.1} parent=1 // pred_check_branch
      %651 = sbr.rel (0) target = $region17
    $region16: #{tpu_custom_call.1} parent=1 // pred_region
      %652 = dma.done [#allocation5], 1024
    $region17: #{tpu_custom_call.1} parent=1 // pred_fallthru
      _
    %653 = vsyncpa [#allocation4], 1
    %654 = vsyncpa [#allocation5], 1

</llo_original>
